<compile_context>
chip_gen: v7x
topology: tpu7x:2x2x1
jax: 0.10.0
libtpu: 0.0.40
codegen_flags: <defaults>
</compile_context>

<pallas_src>
import functools

import jax
import jax.numpy as jnp
from jax.experimental import pallas as pl
from jax.experimental.pallas import tpu as pltpu


NEG_SLOPE = 0.2
BN_EPS = 1e-5


def _round_up(v, m):
    return (v + m - 1) // m * m


def _lrelu(x):
    return jnp.where(x > 0, x, NEG_SLOPE * x)


# --------------------------------------------------------------------------
# Kernel
# --------------------------------------------------------------------------
def fcblock_kernel(x_ref,
                   fc1_w_ref, fc1_b_ref,
                   blk_w1_ref, blk_b1_ref,
                   blk_w2_ref, blk_b2_ref,
                   fc2_w_ref, fc2_b_ref,
                   out_ref,
                   *, block_num):
    # x_ref: (TILE_R, C_in_p) bf16, channel-last.  BN already folded into W/b.
    # Dropout layers are identity at inference.
    h = jnp.dot(x_ref[...], fc1_w_ref[...], preferred_element_type=jnp.float32)
    h = _lrelu(h + fc1_b_ref[...])

    # Residual blocks — statically unrolled (block_num is small); static
    # indexing into the stacked weight refs is a zero-cost view.
    for i in range(block_num):
        y = jnp.dot(h.astype(jnp.bfloat16), blk_w1_ref[i],
                    preferred_element_type=jnp.float32)
        y = _lrelu(y + blk_b1_ref[i])
        y = jnp.dot(y.astype(jnp.bfloat16), blk_w2_ref[i],
                    preferred_element_type=jnp.float32)
        y = _lrelu(y + blk_b2_ref[i])
        h = h + y                      # residual kept in f32

    out = jnp.dot(h.astype(jnp.bfloat16), fc2_w_ref[...],
                  preferred_element_type=jnp.float32)
    out_ref[...] = (out + fc2_b_ref[...]).astype(out_ref.dtype)


# --------------------------------------------------------------------------
# Wrapper
# --------------------------------------------------------------------------
def _fold_bn(w, conv_bias, gamma, beta, mean, var):
    """Fold eval-mode BatchNorm1d into the preceding Conv1d(k=1) weight/bias.

    w: (C_in, C_out) matmul weight.  Returns folded (w, bias)."""
    s = gamma / jnp.sqrt(var + BN_EPS)
    return w * s[None, :], (conv_bias - mean) * s + beta


@functools.partial(jax.jit, static_argnames=("block_num", "tile_r"))
def fcblock_forward(x_ncl, params, *, block_num, tile_r=256):
    """x_ncl: (N, C_in, L) float32.  Returns (N, C_out, L) float32."""
    n, c_in, seq = x_ncl.shape
    linear = params["fc1_w"].shape[1]
    c_out = params["fc2_w"].shape[1]

    # Lane-dense padded dims.
    c_in_p = _round_up(c_in, 128)
    lin_p = _round_up(linear, 128)
    c_out_p = _round_up(c_out, 128)

    r = n * seq
    tile_r = min(tile_r, _round_up(r, 8))
    r_p = _round_up(r, tile_r)

    # NCL -> (R, C_in), zero-pad, cast to bf16 (bf16 MXU path, half the DMA).
    x2d = jnp.transpose(x_ncl, (0, 2, 1)).reshape(r, c_in)
    x2d = jnp.pad(x2d, ((0, r_p - r), (0, c_in_p - c_in))).astype(jnp.bfloat16)

    # ---- fold BN into weights, zero-pad to lane-dense shapes ----
    fc1_w, fc1_b = _fold_bn(params["fc1_w"], params["fc1_bias"],
                            params["bn1_gamma"], params["bn1_beta"],
                            params["bn1_mean"], params["bn1_var"])
    fc1_w = jnp.pad(fc1_w, ((0, c_in_p - c_in), (0, lin_p - linear))).astype(jnp.bfloat16)
    fc1_b = jnp.pad(fc1_b, (0, lin_p - linear)).reshape(1, lin_p).astype(jnp.float32)

    w1s, b1s, w2s, b2s = [], [], [], []
    for i in range(block_num):
        w1, b1 = _fold_bn(params["blk_w1"][i], params["blk_b1"][i],
                          params["blk_bn1_gamma"][i], params["blk_bn1_beta"][i],
                          params["blk_bn1_mean"][i], params["blk_bn1_var"][i])
        w2, b2 = _fold_bn(params["blk_w2"][i], params["blk_b2"][i],
                          params["blk_bn2_gamma"][i], params["blk_bn2_beta"][i],
                          params["blk_bn2_mean"][i], params["blk_bn2_var"][i])
        pad2 = ((0, lin_p - linear), (0, lin_p - linear))
        w1s.append(jnp.pad(w1, pad2))
        w2s.append(jnp.pad(w2, pad2))
        b1s.append(jnp.pad(b1, (0, lin_p - linear)))
        b2s.append(jnp.pad(b2, (0, lin_p - linear)))
    blk_w1 = jnp.stack(w1s).astype(jnp.bfloat16)
    blk_w2 = jnp.stack(w2s).astype(jnp.bfloat16)
    blk_b1 = jnp.stack(b1s).reshape(block_num, 1, lin_p).astype(jnp.float32)
    blk_b2 = jnp.stack(b2s).reshape(block_num, 1, lin_p).astype(jnp.float32)

    fc2_w = jnp.pad(params["fc2_w"],
                    ((0, lin_p - linear), (0, c_out_p - c_out))).astype(jnp.bfloat16)
    fc2_b = jnp.pad(params["fc2_bias"],
                    (0, c_out_p - c_out)).reshape(1, c_out_p).astype(jnp.float32)

    grid = (r_p // tile_r,)
    const2 = lambda i: (0, 0)
    const3 = lambda i: (0, 0, 0)

    flops = 2 * r_p * (c_in_p * lin_p + 2 * block_num * lin_p * lin_p
                       + lin_p * c_out_p)
    bytes_accessed = (x2d.size * 2
                      + (fc1_w.size + blk_w1.size + blk_w2.size + fc2_w.size) * 2
                      + (fc1_b.size + blk_b1.size + blk_b2.size + fc2_b.size) * 4
                      + r_p * c_out_p * 4)

    out2d = pl.pallas_call(
        functools.partial(fcblock_kernel, block_num=block_num),
        out_shape=jax.ShapeDtypeStruct((r_p, c_out_p), jnp.float32),
        grid=grid,
        in_specs=[
            # Activation tile (pipelined per grid step).
            pl.BlockSpec((tile_r, c_in_p), lambda i: (i, 0)),
            # Weights / biases: constant block index -> DMA'd once, stay resident.
            pl.BlockSpec((c_in_p, lin_p), const2),
            pl.BlockSpec((1, lin_p), const2),
            pl.BlockSpec((block_num, lin_p, lin_p), const3),
            pl.BlockSpec((block_num, 1, lin_p), const3),
            pl.BlockSpec((block_num, lin_p, lin_p), const3),
            pl.BlockSpec((block_num, 1, lin_p), const3),
            pl.BlockSpec((lin_p, c_out_p), const2),
            pl.BlockSpec((1, c_out_p), const2),
        ],
        out_specs=pl.BlockSpec((tile_r, c_out_p), lambda i: (i, 0)),
        compiler_params=pltpu.CompilerParams(
            dimension_semantics=("parallel",),      # shard row tiles across TCs
            vmem_limit_bytes=48 * 1024 * 1024),      # fits v7x's 64 MiB budget
        cost_estimate=pl.CostEstimate(flops=int(flops), transcendentals=0,
                                      bytes_accessed=int(bytes_accessed)),
    )(x2d, fc1_w, fc1_b, blk_w1, blk_b1, blk_w2, blk_b2, fc2_w, fc2_b)

    # Strip padding, (R, C_out) -> (N, C_out, L).
    out2d = out2d[:r, :c_out]
    return jnp.transpose(out2d.reshape(n, seq, c_out), (0, 2, 1))


# --------------------------------------------------------------------------
# Pure-JAX reference (f32) for correctness check
# --------------------------------------------------------------------------
def fcblock_reference(x_ncl, params, *, block_num):
    n, c_in, seq = x_ncl.shape
    c_out = params["fc2_w"].shape[1]
    x2d = jnp.transpose(x_ncl, (0, 2, 1)).reshape(n * seq, c_in)

    def bn(h, g, b, m, v):
        return (h - m) / jnp.sqrt(v + BN_EPS) * g + b

    h = x2d @ params["fc1_w"] + params["fc1_bias"]
    h = _lrelu(bn(h, params["bn1_gamma"], params["bn1_beta"],
                  params["bn1_mean"], params["bn1_var"]))
    for i in range(block_num):
        y = h @ params["blk_w1"][i] + params["blk_b1"][i]
        y = _lrelu(bn(y, params["blk_bn1_gamma"][i], params["blk_bn1_beta"][i],
                      params["blk_bn1_mean"][i], params["blk_bn1_var"][i]))
        y = y @ params["blk_w2"][i] + params["blk_b2"][i]
        y = _lrelu(bn(y, params["blk_bn2_gamma"][i], params["blk_bn2_beta"][i],
                      params["blk_bn2_mean"][i], params["blk_bn2_var"][i]))
        h = h + y
    out = h @ params["fc2_w"] + params["fc2_bias"]
    return jnp.transpose(out.reshape(n, seq, c_out), (0, 2, 1))


# --------------------------------------------------------------------------
# Deterministic synthetic parameters (Conv1d(k=1) weight stored as (in, out)).
# --------------------------------------------------------------------------
def init_params(key, channel_in, channel_out, linear_size, block_num):
    keys = jax.random.split(key, 8)
    p = {}
    p["fc1_w"] = 0.1 * jax.random.normal(keys[0], (channel_in, linear_size), jnp.float32)
    p["fc1_bias"] = 0.01 * jax.random.normal(keys[1], (linear_size,), jnp.float32)
    p["bn1_gamma"] = jnp.ones((linear_size,), jnp.float32)
    p["bn1_beta"] = jnp.zeros((linear_size,), jnp.float32)
    p["bn1_mean"] = 0.01 * jax.random.normal(keys[2], (linear_size,), jnp.float32)
    p["bn1_var"] = jnp.ones((linear_size,), jnp.float32)

    p["blk_w1"] = 0.1 * jax.random.normal(keys[3], (block_num, linear_size, linear_size), jnp.float32)
    p["blk_b1"] = jnp.zeros((block_num, linear_size), jnp.float32)
    p["blk_bn1_gamma"] = jnp.ones((block_num, linear_size), jnp.float32)
    p["blk_bn1_beta"] = jnp.zeros((block_num, linear_size), jnp.float32)
    p["blk_bn1_mean"] = jnp.zeros((block_num, linear_size), jnp.float32)
    p["blk_bn1_var"] = jnp.ones((block_num, linear_size), jnp.float32)

    p["blk_w2"] = 0.1 * jax.random.normal(keys[4], (block_num, linear_size, linear_size), jnp.float32)
    p["blk_b2"] = jnp.zeros((block_num, linear_size), jnp.float32)
    p["blk_bn2_gamma"] = jnp.ones((block_num, linear_size), jnp.float32)
    p["blk_bn2_beta"] = jnp.zeros((block_num, linear_size), jnp.float32)
    p["blk_bn2_mean"] = jnp.zeros((block_num, linear_size), jnp.float32)
    p["blk_bn2_var"] = jnp.ones((block_num, linear_size), jnp.float32)

    p["fc2_w"] = 0.1 * jax.random.normal(keys[5], (linear_size, channel_out), jnp.float32)
    p["fc2_bias"] = 0.01 * jax.random.normal(keys[6], (channel_out,), jnp.float32)
    return p


if __name__ == "__main__":
    # Small shapes consistent with the module: Conv1d input is (N, C_in, L).
    N, C_IN, C_OUT, LINEAR, BLOCKS, SEQ = 2, 4, 3, 32, 2, 16

    key = jax.random.PRNGKey(0)
    kx, kp = jax.random.split(key)
    x = jax.random.normal(kx, (N, C_IN, SEQ), jnp.float32)
    params = init_params(kp, C_IN, C_OUT, LINEAR, BLOCKS)

    out = fcblock_forward(x, params, block_num=BLOCKS)
    out = jax.block_until_ready(out)
    assert out.shape == (N, C_OUT, SEQ), out.shape

    ref = jax.block_until_ready(fcblock_reference(x, params, block_num=BLOCKS))
    max_err = float(jnp.max(jnp.abs(out - ref)))
    # bf16 matmul operands with f32 accumulation: generous tolerance.
    assert max_err < 5e-2, f"max abs err {max_err}"

    # TODO(synk): Dropout layers are identity (inference mode); training-mode
    # dropout / batch-stat BN are not implemented.
    print("KERNEL_OK")
</pallas_src>

<mosaic_0001>
module attributes {stable_mosaic.version = 11 : i64} {
  func.func @fcblock_kernel(%arg0: i32, %arg1: memref<32x128xbf16, #tpu.memory_space<vmem>>, %arg2: memref<128x128xbf16, #tpu.memory_space<vmem>>, %arg3: memref<1x128xf32, #tpu.memory_space<vmem>>, %arg4: memref<2x128x128xbf16, #tpu.memory_space<vmem>>, %arg5: memref<2x1x128xf32, #tpu.memory_space<vmem>>, %arg6: memref<2x128x128xbf16, #tpu.memory_space<vmem>>, %arg7: memref<2x1x128xf32, #tpu.memory_space<vmem>>, %arg8: memref<128x128xbf16, #tpu.memory_space<vmem>>, %arg9: memref<1x128xf32, #tpu.memory_space<vmem>>, %arg10: memref<32x128xf32, #tpu.memory_space<vmem>>) attributes {dimension_semantics = [#tpu.dimension_semantics<parallel>], iteration_bounds = array<i64: 1>, scalar_prefetch = 0 : i64, scratch_operands = 0 : i64, tpu.core_type = #tpu.core_type<tc>, window_params = [{transform_indices = @transform_0, window_bounds = array<i64: 32, 128>}, {pipeline_mode = #tpu.pipeline_mode<synchronous>, transform_indices = @transform_1, window_bounds = array<i64: 128, 128>}, {pipeline_mode = #tpu.pipeline_mode<synchronous>, transform_indices = @transform_2, window_bounds = array<i64: 1, 128>}, {pipeline_mode = #tpu.pipeline_mode<synchronous>, transform_indices = @transform_3, window_bounds = array<i64: 2, 128, 128>}, {pipeline_mode = #tpu.pipeline_mode<synchronous>, transform_indices = @transform_4, window_bounds = array<i64: 2, 1, 128>}, {pipeline_mode = #tpu.pipeline_mode<synchronous>, transform_indices = @transform_5, window_bounds = array<i64: 2, 128, 128>}, {pipeline_mode = #tpu.pipeline_mode<synchronous>, transform_indices = @transform_6, window_bounds = array<i64: 2, 1, 128>}, {pipeline_mode = #tpu.pipeline_mode<synchronous>, transform_indices = @transform_7, window_bounds = array<i64: 128, 128>}, {pipeline_mode = #tpu.pipeline_mode<synchronous>, transform_indices = @transform_8, window_bounds = array<i64: 1, 128>}, {transform_indices = @transform_9, window_bounds = array<i64: 32, 128>}]} {
    %c0 = arith.constant 0 : index
    %c0_0 = arith.constant 0 : index
    %0 = vector.load %arg1[%c0, %c0_0] : memref<32x128xbf16, #tpu.memory_space<vmem>>, vector<32x128xbf16>
    %c0_1 = arith.constant 0 : index
    %c0_2 = arith.constant 0 : index
    %1 = vector.load %arg2[%c0_1, %c0_2] : memref<128x128xbf16, #tpu.memory_space<vmem>>, vector<128x128xbf16>
    %cst = arith.constant dense<0.000000e+00> : vector<32x128xf32>
    %2 = tpu.matmul %0, %1, %cst {dimension_numbers = #tpu.dot_dimension_numbers<[1], [0], [0], [1], [0, 0, 1, 1], [], []>} : vector<32x128xbf16>, vector<128x128xbf16>, vector<32x128xf32> -> vector<32x128xf32>
    %c0_3 = arith.constant 0 : index
    %c0_4 = arith.constant 0 : index
    %3 = vector.load %arg3[%c0_3, %c0_4] : memref<1x128xf32, #tpu.memory_space<vmem>>, vector<1x128xf32>
    %4 = vector.broadcast %3 : vector<1x128xf32> to vector<32x128xf32>
    %5 = arith.addf %2, %4 : vector<32x128xf32>
    %cst_5 = arith.constant 0.000000e+00 : f32
    %6 = vector.broadcast %cst_5 : f32 to vector<32x128xf32>
    %7 = arith.cmpf ogt, %5, %6 : vector<32x128xf32>
    %cst_6 = arith.constant 2.000000e-01 : f32
    %8 = vector.broadcast %cst_6 : f32 to vector<32x128xf32>
    %9 = arith.mulf %8, %5 : vector<32x128xf32>
    %10 = arith.select %7, %5, %9 : vector<32x128xi1>, vector<32x128xf32>
    %11 = arith.truncf %10 : vector<32x128xf32> to vector<32x128xbf16>
    %c0_7 = arith.constant 0 : index
    %c0_8 = arith.constant 0 : index
    %c0_9 = arith.constant 0 : index
    %12 = vector.load %arg4[%c0_7, %c0_8, %c0_9] : memref<2x128x128xbf16, #tpu.memory_space<vmem>>, vector<1x128x128xbf16>
    %13 = vector.shape_cast %12 : vector<1x128x128xbf16> to vector<128x128xbf16>
    %cst_10 = arith.constant dense<0.000000e+00> : vector<32x128xf32>
    %14 = tpu.matmul %11, %13, %cst_10 {dimension_numbers = #tpu.dot_dimension_numbers<[1], [0], [0], [1], [0, 0, 1, 1], [], []>} : vector<32x128xbf16>, vector<128x128xbf16>, vector<32x128xf32> -> vector<32x128xf32>
    %c0_11 = arith.constant 0 : index
    %c0_12 = arith.constant 0 : index
    %c0_13 = arith.constant 0 : index
    %15 = vector.load %arg5[%c0_11, %c0_12, %c0_13] : memref<2x1x128xf32, #tpu.memory_space<vmem>>, vector<1x1x128xf32>
    %16 = vector.shape_cast %15 : vector<1x1x128xf32> to vector<1x128xf32>
    %17 = vector.broadcast %16 : vector<1x128xf32> to vector<32x128xf32>
    %18 = arith.addf %14, %17 : vector<32x128xf32>
    %cst_14 = arith.constant 0.000000e+00 : f32
    %19 = vector.broadcast %cst_14 : f32 to vector<32x128xf32>
    %20 = arith.cmpf ogt, %18, %19 : vector<32x128xf32>
    %cst_15 = arith.constant 2.000000e-01 : f32
    %21 = vector.broadcast %cst_15 : f32 to vector<32x128xf32>
    %22 = arith.mulf %21, %18 : vector<32x128xf32>
    %23 = arith.select %20, %18, %22 : vector<32x128xi1>, vector<32x128xf32>
    %24 = arith.truncf %23 : vector<32x128xf32> to vector<32x128xbf16>
    %c0_16 = arith.constant 0 : index
    %c0_17 = arith.constant 0 : index
    %c0_18 = arith.constant 0 : index
    %25 = vector.load %arg6[%c0_16, %c0_17, %c0_18] : memref<2x128x128xbf16, #tpu.memory_space<vmem>>, vector<1x128x128xbf16>
    %26 = vector.shape_cast %25 : vector<1x128x128xbf16> to vector<128x128xbf16>
    %cst_19 = arith.constant dense<0.000000e+00> : vector<32x128xf32>
    %27 = tpu.matmul %24, %26, %cst_19 {dimension_numbers = #tpu.dot_dimension_numbers<[1], [0], [0], [1], [0, 0, 1, 1], [], []>} : vector<32x128xbf16>, vector<128x128xbf16>, vector<32x128xf32> -> vector<32x128xf32>
    %c0_20 = arith.constant 0 : index
    %c0_21 = arith.constant 0 : index
    %c0_22 = arith.constant 0 : index
    %28 = vector.load %arg7[%c0_20, %c0_21, %c0_22] : memref<2x1x128xf32, #tpu.memory_space<vmem>>, vector<1x1x128xf32>
    %29 = vector.shape_cast %28 : vector<1x1x128xf32> to vector<1x128xf32>
    %30 = vector.broadcast %29 : vector<1x128xf32> to vector<32x128xf32>
    %31 = arith.addf %27, %30 : vector<32x128xf32>
    %cst_23 = arith.constant 0.000000e+00 : f32
    %32 = vector.broadcast %cst_23 : f32 to vector<32x128xf32>
    %33 = arith.cmpf ogt, %31, %32 : vector<32x128xf32>
    %cst_24 = arith.constant 2.000000e-01 : f32
    %34 = vector.broadcast %cst_24 : f32 to vector<32x128xf32>
    %35 = arith.mulf %34, %31 : vector<32x128xf32>
    %36 = arith.select %33, %31, %35 : vector<32x128xi1>, vector<32x128xf32>
    %37 = arith.addf %10, %36 : vector<32x128xf32>
    %38 = arith.truncf %37 : vector<32x128xf32> to vector<32x128xbf16>
    %c1 = arith.constant 1 : index
    %c0_25 = arith.constant 0 : index
    %c0_26 = arith.constant 0 : index
    %39 = vector.load %arg4[%c1, %c0_25, %c0_26] : memref<2x128x128xbf16, #tpu.memory_space<vmem>>, vector<1x128x128xbf16>
    %40 = vector.shape_cast %39 : vector<1x128x128xbf16> to vector<128x128xbf16>
    %cst_27 = arith.constant dense<0.000000e+00> : vector<32x128xf32>
    %41 = tpu.matmul %38, %40, %cst_27 {dimension_numbers = #tpu.dot_dimension_numbers<[1], [0], [0], [1], [0, 0, 1, 1], [], []>} : vector<32x128xbf16>, vector<128x128xbf16>, vector<32x128xf32> -> vector<32x128xf32>
    %c1_28 = arith.constant 1 : index
    %c0_29 = arith.constant 0 : index
    %c0_30 = arith.constant 0 : index
    %42 = vector.load %arg5[%c1_28, %c0_29, %c0_30] : memref<2x1x128xf32, #tpu.memory_space<vmem>>, vector<1x1x128xf32>
    %43 = vector.shape_cast %42 : vector<1x1x128xf32> to vector<1x128xf32>
    %44 = vector.broadcast %43 : vector<1x128xf32> to vector<32x128xf32>
    %45 = arith.addf %41, %44 : vector<32x128xf32>
    %cst_31 = arith.constant 0.000000e+00 : f32
    %46 = vector.broadcast %cst_31 : f32 to vector<32x128xf32>
    %47 = arith.cmpf ogt, %45, %46 : vector<32x128xf32>
    %cst_32 = arith.constant 2.000000e-01 : f32
    %48 = vector.broadcast %cst_32 : f32 to vector<32x128xf32>
    %49 = arith.mulf %48, %45 : vector<32x128xf32>
    %50 = arith.select %47, %45, %49 : vector<32x128xi1>, vector<32x128xf32>
    %51 = arith.truncf %50 : vector<32x128xf32> to vector<32x128xbf16>
    %c1_33 = arith.constant 1 : index
    %c0_34 = arith.constant 0 : index
    %c0_35 = arith.constant 0 : index
    %52 = vector.load %arg6[%c1_33, %c0_34, %c0_35] : memref<2x128x128xbf16, #tpu.memory_space<vmem>>, vector<1x128x128xbf16>
    %53 = vector.shape_cast %52 : vector<1x128x128xbf16> to vector<128x128xbf16>
    %cst_36 = arith.constant dense<0.000000e+00> : vector<32x128xf32>
    %54 = tpu.matmul %51, %53, %cst_36 {dimension_numbers = #tpu.dot_dimension_numbers<[1], [0], [0], [1], [0, 0, 1, 1], [], []>} : vector<32x128xbf16>, vector<128x128xbf16>, vector<32x128xf32> -> vector<32x128xf32>
    %c1_37 = arith.constant 1 : index
    %c0_38 = arith.constant 0 : index
    %c0_39 = arith.constant 0 : index
    %55 = vector.load %arg7[%c1_37, %c0_38, %c0_39] : memref<2x1x128xf32, #tpu.memory_space<vmem>>, vector<1x1x128xf32>
    %56 = vector.shape_cast %55 : vector<1x1x128xf32> to vector<1x128xf32>
    %57 = vector.broadcast %56 : vector<1x128xf32> to vector<32x128xf32>
    %58 = arith.addf %54, %57 : vector<32x128xf32>
    %cst_40 = arith.constant 0.000000e+00 : f32
    %59 = vector.broadcast %cst_40 : f32 to vector<32x128xf32>
    %60 = arith.cmpf ogt, %58, %59 : vector<32x128xf32>
    %cst_41 = arith.constant 2.000000e-01 : f32
    %61 = vector.broadcast %cst_41 : f32 to vector<32x128xf32>
    %62 = arith.mulf %61, %58 : vector<32x128xf32>
    %63 = arith.select %60, %58, %62 : vector<32x128xi1>, vector<32x128xf32>
    %64 = arith.addf %37, %63 : vector<32x128xf32>
    %65 = arith.truncf %64 : vector<32x128xf32> to vector<32x128xbf16>
    %c0_42 = arith.constant 0 : index
    %c0_43 = arith.constant 0 : index
    %66 = vector.load %arg8[%c0_42, %c0_43] : memref<128x128xbf16, #tpu.memory_space<vmem>>, vector<128x128xbf16>
    %cst_44 = arith.constant dense<0.000000e+00> : vector<32x128xf32>
    %67 = tpu.matmul %65, %66, %cst_44 {dimension_numbers = #tpu.dot_dimension_numbers<[1], [0], [0], [1], [0, 0, 1, 1], [], []>} : vector<32x128xbf16>, vector<128x128xbf16>, vector<32x128xf32> -> vector<32x128xf32>
    %c0_45 = arith.constant 0 : index
    %c0_46 = arith.constant 0 : index
    %68 = vector.load %arg9[%c0_45, %c0_46] : memref<1x128xf32, #tpu.memory_space<vmem>>, vector<1x128xf32>
    %69 = vector.broadcast %68 : vector<1x128xf32> to vector<32x128xf32>
    %70 = arith.addf %67, %69 : vector<32x128xf32>
    %c0_47 = arith.constant 0 : index
    %c0_48 = arith.constant 0 : index
    %71 = vector.load %arg10[%c0_47, %c0_48] : memref<32x128xf32, #tpu.memory_space<vmem>>, vector<32x128xf32>
    tpu.vector_store %arg10[%c0_47, %c0_48], %70 {strides = array<i32>} : memref<32x128xf32, #tpu.memory_space<vmem>>, vector<32x128xf32>,
    return
  }
  func.func @transform_0(%arg0: i32) -> (i32, i32) {
    %c0_i32 = arith.constant 0 : i32
    %c0_i32_0 = arith.constant 0 : i32
    return %arg0, %c0_i32 : i32, i32
  }
  func.func @transform_1(%arg0: i32) -> (i32, i32) {
    %c0_i32 = arith.constant 0 : i32
    %c0_i32_0 = arith.constant 0 : i32
    %c0_i32_1 = arith.constant 0 : i32
    return %c0_i32, %c0_i32_0 : i32, i32
  }
  func.func @transform_2(%arg0: i32) -> (i32, i32) {
    %c0_i32 = arith.constant 0 : i32
    %c0_i32_0 = arith.constant 0 : i32
    %c0_i32_1 = arith.constant 0 : i32
    return %c0_i32, %c0_i32_0 : i32, i32
  }
  func.func @transform_3(%arg0: i32) -> (i32, i32, i32) {
    %c0_i32 = arith.constant 0 : i32
    %c0_i32_0 = arith.constant 0 : i32
    %c0_i32_1 = arith.constant 0 : i32
    %c0_i32_2 = arith.constant 0 : i32
    return %c0_i32, %c0_i32_0, %c0_i32_1 : i32, i32, i32
  }
  func.func @transform_4(%arg0: i32) -> (i32, i32, i32) {
    %c0_i32 = arith.constant 0 : i32
    %c0_i32_0 = arith.constant 0 : i32
    %c0_i32_1 = arith.constant 0 : i32
    %c0_i32_2 = arith.constant 0 : i32
    return %c0_i32, %c0_i32_0, %c0_i32_1 : i32, i32, i32
  }
  func.func @transform_5(%arg0: i32) -> (i32, i32, i32) {
    %c0_i32 = arith.constant 0 : i32
    %c0_i32_0 = arith.constant 0 : i32
    %c0_i32_1 = arith.constant 0 : i32
    %c0_i32_2 = arith.constant 0 : i32
    return %c0_i32, %c0_i32_0, %c0_i32_1 : i32, i32, i32
  }
  func.func @transform_6(%arg0: i32) -> (i32, i32, i32) {
    %c0_i32 = arith.constant 0 : i32
    %c0_i32_0 = arith.constant 0 : i32
    %c0_i32_1 = arith.constant 0 : i32
    %c0_i32_2 = arith.constant 0 : i32
    return %c0_i32, %c0_i32_0, %c0_i32_1 : i32, i32, i32
  }
  func.func @transform_7(%arg0: i32) -> (i32, i32) {
    %c0_i32 = arith.constant 0 : i32
    %c0_i32_0 = arith.constant 0 : i32
    %c0_i32_1 = arith.constant 0 : i32
    return %c0_i32, %c0_i32_0 : i32, i32
  }
  func.func @transform_8(%arg0: i32) -> (i32, i32) {
    %c0_i32 = arith.constant 0 : i32
    %c0_i32_0 = arith.constant 0 : i32
    %c0_i32_1 = arith.constant 0 : i32
    return %c0_i32, %c0_i32_0 : i32, i32
  }
  func.func @transform_9(%arg0: i32) -> (i32, i32) {
    %c0_i32 = arith.constant 0 : i32
    %c0_i32_0 = arith.constant 0 : i32
    return %arg0, %c0_i32 : i32, i32
  }
}

</mosaic_0001>

<llo_original>
// kernel: fcblock_forward.1
$region0: #{fcblock_forward.1}
  #allocation0 [shape = 'u32[]', space=smem, size = 0x4, offset = 0x4, fixed_abs, tag = 'smem constant byte address 0x4 - core index']
  #allocation1 [shape = 'u32[144,128]{1,0:T(1,128)}', space=vmem, size = 0x12000, scoped, tag = 'internal scratch']
  %s0 = inlined_call_operand.vmem [shape: bf16[32,128], index: 0, kind: input, shape index: {}]
  %s1 = inlined_call_operand.vmem [shape: bf16[128,128], index: 1, kind: input, shape index: {}]
  %s2 = inlined_call_operand.vmem [shape: f32[1,128], index: 2, kind: input, shape index: {}]
  %s3 = inlined_call_operand.vmem [shape: bf16[2,128,128], index: 3, kind: input, shape index: {}]
  %s4 = inlined_call_operand.vmem [shape: f32[2,1,128], index: 4, kind: input, shape index: {}]
  %s5 = inlined_call_operand.vmem [shape: bf16[2,128,128], index: 5, kind: input, shape index: {}]
  %s6 = inlined_call_operand.vmem [shape: f32[2,1,128], index: 6, kind: input, shape index: {}]
  %s7 = inlined_call_operand.vmem [shape: bf16[128,128], index: 7, kind: input, shape index: {}]
  %s8 = inlined_call_operand.vmem [shape: f32[1,128], index: 8, kind: input, shape index: {}]
  %s9 = inlined_call_operand.vmem [shape: f32[32,128], index: 9, kind: output, shape index: {}]
  %s10 = sld [smem:[#allocation0]]
  $region46: #{fcblock_forward.1} parent=0
    _
  %s12 = ssub.s32 1, %s10
  %s13 = scalar_select 0, %s12, %s10
  // Predicated region
  $region2: #{fcblock_forward.1} parent=0 // pred_check
    _
  $region3: #{fcblock_forward.1} parent=0 // pred_check_branch
    %15 = sbr.rel (0) target = $region5
  $region4: #{fcblock_forward.1} parent=0 // pred_region
    _
  $region5: #{fcblock_forward.1} parent=0 // pred_fallthru
    _
  // Predicated region
  $region6: #{fcblock_forward.1} parent=0 // pred_check
    _
  $region7: #{fcblock_forward.1} parent=0 // pred_check_branch
    %17 = sbr.rel (0) target = $region9
  $region8: #{fcblock_forward.1} parent=0 // pred_region
    _
  $region9: #{fcblock_forward.1} parent=0 // pred_fallthru
    _
  // Predicated region
  $region10: #{fcblock_forward.1} parent=0 // pred_check
    _
  $region11: #{fcblock_forward.1} parent=0 // pred_check_branch
    %19 = sbr.rel (0) target = $region13
  $region12: #{fcblock_forward.1} parent=0 // pred_region
    _
  $region13: #{fcblock_forward.1} parent=0 // pred_fallthru
    _
  // Predicated region
  $region14: #{fcblock_forward.1} parent=0 // pred_check
    _
  $region15: #{fcblock_forward.1} parent=0 // pred_check_branch
    %21 = sbr.rel (0) target = $region17
  $region16: #{fcblock_forward.1} parent=0 // pred_region
    _
  $region17: #{fcblock_forward.1} parent=0 // pred_fallthru
    _
  // Predicated region
  $region18: #{fcblock_forward.1} parent=0 // pred_check
    _
  $region19: #{fcblock_forward.1} parent=0 // pred_check_branch
    %23 = sbr.rel (0) target = $region21
  $region20: #{fcblock_forward.1} parent=0 // pred_region
    _
  $region21: #{fcblock_forward.1} parent=0 // pred_fallthru
    _
  // Predicated region
  $region22: #{fcblock_forward.1} parent=0 // pred_check
    _
  $region23: #{fcblock_forward.1} parent=0 // pred_check_branch
    %25 = sbr.rel (0) target = $region25
  $region24: #{fcblock_forward.1} parent=0 // pred_region
    _
  $region25: #{fcblock_forward.1} parent=0 // pred_fallthru
    _
  // Predicated region
  $region26: #{fcblock_forward.1} parent=0 // pred_check
    _
  $region27: #{fcblock_forward.1} parent=0 // pred_check_branch
    %27 = sbr.rel (0) target = $region29
  $region28: #{fcblock_forward.1} parent=0 // pred_region
    _
  $region29: #{fcblock_forward.1} parent=0 // pred_fallthru
    _
  // Predicated region
  $region30: #{fcblock_forward.1} parent=0 // pred_check
    _
  $region31: #{fcblock_forward.1} parent=0 // pred_check_branch
    %29 = sbr.rel (0) target = $region33
  $region32: #{fcblock_forward.1} parent=0 // pred_region
    _
  $region33: #{fcblock_forward.1} parent=0 // pred_fallthru
    _
  // Predicated region
  $region34: #{fcblock_forward.1} parent=0 // pred_check
    _
  $region35: #{fcblock_forward.1} parent=0 // pred_check_branch
    %31 = sbr.rel (0) target = $region37
  $region36: #{fcblock_forward.1} parent=0 // pred_region
    _
  $region37: #{fcblock_forward.1} parent=0 // pred_fallthru
    _
  %v33 = vld [vmem:[%s0] sm:$0xf]
  %v34 = vld [vmem:[%s0 + $0x4] sm:$0xf]
  %v35 = vld [vmem:[%s0 + $0x8] sm:$0xf]
  %v36 = vld [vmem:[%s0 + $0xc] sm:$0xf]
  %v37 = vld [vmem:[%s1] sm:$0xf]
  %v38 = vld [vmem:[%s1 + $0x4] sm:$0xf]
  %v39 = vld [vmem:[%s1 + $0x8] sm:$0xf]
  %v40 = vld [vmem:[%s1 + $0xc] sm:$0xf]
  %v41 = vld [vmem:[%s1 + $0x10] sm:$0xf]
  %v42 = vld [vmem:[%s1 + $0x14] sm:$0xf]
  %v43 = vld [vmem:[%s1 + $0x18] sm:$0xf]
  %v44 = vld [vmem:[%s1 + $0x1c] sm:$0xf]
  %v45 = vld [vmem:[%s1 + $0x20] sm:$0xf]
  %v46 = vld [vmem:[%s1 + $0x24] sm:$0xf]
  %v47 = vld [vmem:[%s1 + $0x28] sm:$0xf]
  %v48 = vld [vmem:[%s1 + $0x2c] sm:$0xf]
  %v49 = vld [vmem:[%s1 + $0x30] sm:$0xf]
  %v50 = vld [vmem:[%s1 + $0x34] sm:$0xf]
  %v51 = vld [vmem:[%s1 + $0x38] sm:$0xf]
  %v52 = vld [vmem:[%s1 + $0x3c] sm:$0xf]
  %v53 = vld [vmem:[%s2] sm:$0x1]
  %v55 = vlaneseq
  %v56 = vshrl.u32 %v55, 7
  %v57 = vsub.s32 0, %v56
  %v58 = vrot.slane %v53, %v57
  %v64 = vunpack.c.l.b16 %v33
  %v65 = vunpack.c.l.b16 %v34
  %v66 = vunpack.c.l.b16 %v35
  %v67 = vunpack.c.l.b16 %v36
  %v68 = vpack.c.b16 %v65, %v64
  %v69 = vpack.c.b16 %v67, %v66
  %v88 = vunpack.c.l.b16 %v37
  %v89 = vunpack.c.l.b16 %v38
  %v90 = vunpack.c.l.b16 %v39
  %v91 = vunpack.c.l.b16 %v40
  %v92 = vunpack.c.l.b16 %v41
  %v93 = vunpack.c.l.b16 %v42
  %v94 = vunpack.c.l.b16 %v43
  %v95 = vunpack.c.l.b16 %v44
  %v96 = vunpack.c.l.b16 %v45
  %v97 = vunpack.c.l.b16 %v46
  %v98 = vunpack.c.l.b16 %v47
  %v99 = vunpack.c.l.b16 %v48
  %v100 = vunpack.c.l.b16 %v49
  %v101 = vunpack.c.l.b16 %v50
  %v102 = vunpack.c.l.b16 %v51
  %v103 = vunpack.c.l.b16 %v52
  %v104 = vpack.c.b16 %v89, %v88
  %v105 = vpack.c.b16 %v91, %v90
  %v106 = vpack.c.b16 %v93, %v92
  %v107 = vpack.c.b16 %v95, %v94
  %v108 = vpack.c.b16 %v97, %v96
  %v109 = vpack.c.b16 %v99, %v98
  %v110 = vpack.c.b16 %v101, %v100
  %v111 = vpack.c.b16 %v103, %v102
  %120 = vmatprep.subr.bf16.mxu0 0
  %121 = vmatpush1.bf16.msra.mxu0 %v104
  %122 = vmatprep.subr.bf16.mxu0 0
  %123 = vmatpush1.bf16.msra.mxu0 %v105
  %124 = vmatprep.subr.bf16.mxu0 0
  %125 = vmatpush1.bf16.msra.mxu0 %v106
  %126 = vmatprep.subr.bf16.mxu0 0
  %127 = vmatpush1.bf16.msra.mxu0 %v107
  %128 = vmatprep.subr.bf16.mxu0 0
  %129 = vmatpush1.bf16.msra.mxu0 %v108
  %130 = vmatprep.subr.bf16.mxu0 0
  %131 = vmatpush1.bf16.msra.mxu0 %v109
  %132 = vmatprep.subr.bf16.mxu0 0
  %133 = vmatpush1.bf16.msra.mxu0 %v110
  %134 = vmatprep.subr.bf16.mxu0 0
  %135 = vmatpush1.bf16.msra.mxu0 %v111
  %136 = vmatprep.subr.bf16.mxu0 0
  %137 = vmatpush1.bf16.msra.mxu0 0
  %138 = vmatprep.subr.bf16.mxu0 0
  %139 = vmatpush1.bf16.msra.mxu0 0
  %140 = vmatprep.subr.bf16.mxu0 0
  %141 = vmatpush1.bf16.msra.mxu0 0
  %142 = vmatprep.subr.bf16.mxu0 0
  %143 = vmatpush1.bf16.msra.mxu0 0
  %144 = vmatprep.subr.bf16.mxu0 0
  %145 = vmatpush1.bf16.msra.mxu0 0
  %146 = vmatprep.subr.bf16.mxu0 0
  %147 = vmatpush1.bf16.msra.mxu0 0
  %148 = vmatprep.subr.bf16.mxu0 0
  %149 = vmatpush1.bf16.msra.mxu0 0
  %150 = vmatprep.subr.bf16.mxu0 0
  %151 = vmatpush1.bf16.msra.mxu0 0
  %152 = vmatprep.mubr.bf16.mxu0 0
  %153 = vmatmul.mubr.bf16.gmra.mrb[0].mxu0 %v68
  %v154 = vpop.f32.mrb[0].mxu0
  %v155 = vadd.f32 %v58, %v154
  %v156 = vpop.f32.mrb[0].mxu0
  %v157 = vpop.f32.mrb[0].mxu0
  %v158 = vadd.f32 %v58, %v157
  %v159 = vpop.f32.mrb[0].mxu0
  %160 = vmatprep.mubr.bf16.mxu0 0
  %161 = vmatmul.mubr.bf16.gmra.mrb[0].mxu0 %v69
  %v162 = vpop.f32.mrb[0].mxu0
  %v163 = vadd.f32 %v58, %v162
  %v164 = vpop.f32.mrb[0].mxu0
  %v165 = vpop.f32.mrb[0].mxu0
  %v166 = vadd.f32 %v58, %v165
  %v167 = vpop.f32.mrb[0].mxu0
  %168 = vdwg.mxu0
  %vm169 = vcmp.gt.f32.partialorder %v155, 0.0
  %vm170 = vcmp.gt.f32.partialorder %v158, 0.0
  %vm171 = vcmp.gt.f32.partialorder %v163, 0.0
  %vm172 = vcmp.gt.f32.partialorder %v166, 0.0
  %v173 = vmul.f32 %v155, 0.2
  %v174 = vmul.f32 %v158, 0.2
  %v175 = vmul.f32 %v163, 0.2
  %v176 = vmul.f32 %v166, 0.2
  %v177 = vsel %vm169, %v155, %v173
  %v178 = vsel %vm170, %v158, %v174
  %v179 = vsel %vm171, %v163, %v175
  %v180 = vsel %vm172, %v166, %v176
  %v181 = vpack.c.bf16 %v178, %v177
  %v182 = vpack.c.bf16 %v180, %v179
  %v183 = vld [vmem:[%s3] sm:$0xf]
  %v184 = vld [vmem:[%s3 + $0x4] sm:$0xf]
  %v185 = vld [vmem:[%s3 + $0x8] sm:$0xf]
  %v186 = vld [vmem:[%s3 + $0xc] sm:$0xf]
  %v187 = vld [vmem:[%s3 + $0x10] sm:$0xf]
  %v188 = vld [vmem:[%s3 + $0x14] sm:$0xf]
  %v189 = vld [vmem:[%s3 + $0x18] sm:$0xf]
  %v190 = vld [vmem:[%s3 + $0x1c] sm:$0xf]
  %v191 = vld [vmem:[%s3 + $0x20] sm:$0xf]
  %v192 = vld [vmem:[%s3 + $0x24] sm:$0xf]
  %v193 = vld [vmem:[%s3 + $0x28] sm:$0xf]
  %v194 = vld [vmem:[%s3 + $0x2c] sm:$0xf]
  %v195 = vld [vmem:[%s3 + $0x30] sm:$0xf]
  %v196 = vld [vmem:[%s3 + $0x34] sm:$0xf]
  %v197 = vld [vmem:[%s3 + $0x38] sm:$0xf]
  %v198 = vld [vmem:[%s3 + $0x3c] sm:$0xf]
  %v199 = vld [vmem:[%s4] sm:$0x1]
  %v201 = vlaneseq
  %v202 = vshrl.u32 %v201, 7
  %v203 = vsub.s32 0, %v202
  %v204 = vrot.slane %v199, %v203
  %v222 = vunpack.c.l.b16 %v183
  %v223 = vunpack.c.l.b16 %v184
  %v224 = vunpack.c.l.b16 %v185
  %v225 = vunpack.c.l.b16 %v186
  %v226 = vunpack.c.l.b16 %v187
  %v227 = vunpack.c.l.b16 %v188
  %v228 = vunpack.c.l.b16 %v189
  %v229 = vunpack.c.l.b16 %v190
  %v230 = vunpack.c.l.b16 %v191
  %v231 = vunpack.c.l.b16 %v192
  %v232 = vunpack.c.l.b16 %v193
  %v233 = vunpack.c.l.b16 %v194
  %v234 = vunpack.c.l.b16 %v195
  %v235 = vunpack.c.l.b16 %v196
  %v236 = vunpack.c.l.b16 %v197
  %v237 = vunpack.c.l.b16 %v198
  %v238 = vpack.c.b16 %v223, %v222
  %v239 = vpack.c.b16 %v225, %v224
  %v240 = vpack.c.b16 %v227, %v226
  %v241 = vpack.c.b16 %v229, %v228
  %v242 = vpack.c.b16 %v231, %v230
  %v243 = vpack.c.b16 %v233, %v232
  %v244 = vpack.c.b16 %v235, %v234
  %v245 = vpack.c.b16 %v237, %v236
  %254 = vmatprep.subr.bf16.mxu0 0
  %255 = vmatpush1.bf16.msra.mxu0 %v238
  %256 = vmatprep.subr.bf16.mxu0 0
  %257 = vmatpush1.bf16.msra.mxu0 %v239
  %258 = vmatprep.subr.bf16.mxu0 0
  %259 = vmatpush1.bf16.msra.mxu0 %v240
  %260 = vmatprep.subr.bf16.mxu0 0
  %261 = vmatpush1.bf16.msra.mxu0 %v241
  %262 = vmatprep.subr.bf16.mxu0 0
  %263 = vmatpush1.bf16.msra.mxu0 %v242
  %264 = vmatprep.subr.bf16.mxu0 0
  %265 = vmatpush1.bf16.msra.mxu0 %v243
  %266 = vmatprep.subr.bf16.mxu0 0
  %267 = vmatpush1.bf16.msra.mxu0 %v244
  %268 = vmatprep.subr.bf16.mxu0 0
  %269 = vmatpush1.bf16.msra.mxu0 %v245
  %270 = vmatprep.subr.bf16.mxu0 0
  %271 = vmatpush1.bf16.msra.mxu0 0
  %272 = vmatprep.subr.bf16.mxu0 0
  %273 = vmatpush1.bf16.msra.mxu0 0
  %274 = vmatprep.subr.bf16.mxu0 0
  %275 = vmatpush1.bf16.msra.mxu0 0
  %276 = vmatprep.subr.bf16.mxu0 0
  %277 = vmatpush1.bf16.msra.mxu0 0
  %278 = vmatprep.subr.bf16.mxu0 0
  %279 = vmatpush1.bf16.msra.mxu0 0
  %280 = vmatprep.subr.bf16.mxu0 0
  %281 = vmatpush1.bf16.msra.mxu0 0
  %282 = vmatprep.subr.bf16.mxu0 0
  %283 = vmatpush1.bf16.msra.mxu0 0
  %284 = vmatprep.subr.bf16.mxu0 0
  %285 = vmatpush1.bf16.msra.mxu0 0
  %286 = vmatprep.mubr.bf16.mxu0 0
  %287 = vmatmul.mubr.bf16.gmra.mrb[0].mxu0 %v181
  %v288 = vpop.f32.mrb[0].mxu0
  %v289 = vadd.f32 %v204, %v288
  %v290 = vpop.f32.mrb[0].mxu0
  %v291 = vpop.f32.mrb[0].mxu0
  %v292 = vadd.f32 %v204, %v291
  %v293 = vpop.f32.mrb[0].mxu0
  %294 = vmatprep.mubr.bf16.mxu0 0
  %295 = vmatmul.mubr.bf16.gmra.mrb[0].mxu0 %v182
  %v296 = vpop.f32.mrb[0].mxu0
  %v297 = vadd.f32 %v204, %v296
  %v298 = vpop.f32.mrb[0].mxu0
  %v299 = vpop.f32.mrb[0].mxu0
  %v300 = vadd.f32 %v204, %v299
  %v301 = vpop.f32.mrb[0].mxu0
  %302 = vdwg.mxu0
  %vm303 = vcmp.gt.f32.partialorder %v289, 0.0
  %vm304 = vcmp.gt.f32.partialorder %v292, 0.0
  %vm305 = vcmp.gt.f32.partialorder %v297, 0.0
  %vm306 = vcmp.gt.f32.partialorder %v300, 0.0
  %v307 = vmul.f32 %v289, 0.2
  %v308 = vmul.f32 %v292, 0.2
  %v309 = vmul.f32 %v297, 0.2
  %v310 = vmul.f32 %v300, 0.2
  %v311 = vsel %vm303, %v289, %v307
  %v312 = vsel %vm304, %v292, %v308
  %v313 = vsel %vm305, %v297, %v309
  %v314 = vsel %vm306, %v300, %v310
  %v315 = vpack.c.bf16 %v312, %v311
  %v316 = vpack.c.bf16 %v314, %v313
  %v317 = vld [vmem:[%s5] sm:$0xf]
  %v318 = vld [vmem:[%s5 + $0x4] sm:$0xf]
  %v319 = vld [vmem:[%s5 + $0x8] sm:$0xf]
  %v320 = vld [vmem:[%s5 + $0xc] sm:$0xf]
  %v321 = vld [vmem:[%s5 + $0x10] sm:$0xf]
  %v322 = vld [vmem:[%s5 + $0x14] sm:$0xf]
  %v323 = vld [vmem:[%s5 + $0x18] sm:$0xf]
  %v324 = vld [vmem:[%s5 + $0x1c] sm:$0xf]
  %v325 = vld [vmem:[%s5 + $0x20] sm:$0xf]
  %v326 = vld [vmem:[%s5 + $0x24] sm:$0xf]
  %v327 = vld [vmem:[%s5 + $0x28] sm:$0xf]
  %v328 = vld [vmem:[%s5 + $0x2c] sm:$0xf]
  %v329 = vld [vmem:[%s5 + $0x30] sm:$0xf]
  %v330 = vld [vmem:[%s5 + $0x34] sm:$0xf]
  %v331 = vld [vmem:[%s5 + $0x38] sm:$0xf]
  %v332 = vld [vmem:[%s5 + $0x3c] sm:$0xf]
  %v333 = vld [vmem:[%s6] sm:$0x1]
  %v335 = vlaneseq
  %v336 = vshrl.u32 %v335, 7
  %v337 = vsub.s32 0, %v336
  %v338 = vrot.slane %v333, %v337
  %v356 = vunpack.c.l.b16 %v317
  %v357 = vunpack.c.l.b16 %v318
  %v358 = vunpack.c.l.b16 %v319
  %v359 = vunpack.c.l.b16 %v320
  %v360 = vunpack.c.l.b16 %v321
  %v361 = vunpack.c.l.b16 %v322
  %v362 = vunpack.c.l.b16 %v323
  %v363 = vunpack.c.l.b16 %v324
  %v364 = vunpack.c.l.b16 %v325
  %v365 = vunpack.c.l.b16 %v326
  %v366 = vunpack.c.l.b16 %v327
  %v367 = vunpack.c.l.b16 %v328
  %v368 = vunpack.c.l.b16 %v329
  %v369 = vunpack.c.l.b16 %v330
  %v370 = vunpack.c.l.b16 %v331
  %v371 = vunpack.c.l.b16 %v332
  %v372 = vpack.c.b16 %v357, %v356
  %v373 = vpack.c.b16 %v359, %v358
  %v374 = vpack.c.b16 %v361, %v360
  %v375 = vpack.c.b16 %v363, %v362
  %v376 = vpack.c.b16 %v365, %v364
  %v377 = vpack.c.b16 %v367, %v366
  %v378 = vpack.c.b16 %v369, %v368
  %v379 = vpack.c.b16 %v371, %v370
  %388 = vmatprep.subr.bf16.mxu0 0
  %389 = vmatpush1.bf16.msra.mxu0 %v372
  %390 = vmatprep.subr.bf16.mxu0 0
  %391 = vmatpush1.bf16.msra.mxu0 %v373
  %392 = vmatprep.subr.bf16.mxu0 0
  %393 = vmatpush1.bf16.msra.mxu0 %v374
  %394 = vmatprep.subr.bf16.mxu0 0
  %395 = vmatpush1.bf16.msra.mxu0 %v375
  %396 = vmatprep.subr.bf16.mxu0 0
  %397 = vmatpush1.bf16.msra.mxu0 %v376
  %398 = vmatprep.subr.bf16.mxu0 0
  %399 = vmatpush1.bf16.msra.mxu0 %v377
  %400 = vmatprep.subr.bf16.mxu0 0
  %401 = vmatpush1.bf16.msra.mxu0 %v378
  %402 = vmatprep.subr.bf16.mxu0 0
  %403 = vmatpush1.bf16.msra.mxu0 %v379
  %404 = vmatprep.subr.bf16.mxu0 0
  %405 = vmatpush1.bf16.msra.mxu0 0
  %406 = vmatprep.subr.bf16.mxu0 0
  %407 = vmatpush1.bf16.msra.mxu0 0
  %408 = vmatprep.subr.bf16.mxu0 0
  %409 = vmatpush1.bf16.msra.mxu0 0
  %410 = vmatprep.subr.bf16.mxu0 0
  %411 = vmatpush1.bf16.msra.mxu0 0
  %412 = vmatprep.subr.bf16.mxu0 0
  %413 = vmatpush1.bf16.msra.mxu0 0
  %414 = vmatprep.subr.bf16.mxu0 0
  %415 = vmatpush1.bf16.msra.mxu0 0
  %416 = vmatprep.subr.bf16.mxu0 0
  %417 = vmatpush1.bf16.msra.mxu0 0
  %418 = vmatprep.subr.bf16.mxu0 0
  %419 = vmatpush1.bf16.msra.mxu0 0
  %420 = vmatprep.mubr.bf16.mxu0 0
  %421 = vmatmul.mubr.bf16.gmra.mrb[0].mxu0 %v315
  %v422 = vpop.f32.mrb[0].mxu0
  %v423 = vadd.f32 %v338, %v422
  %v424 = vpop.f32.mrb[0].mxu0
  %v425 = vpop.f32.mrb[0].mxu0
  %v426 = vadd.f32 %v338, %v425
  %v427 = vpop.f32.mrb[0].mxu0
  %428 = vmatprep.mubr.bf16.mxu0 0
  %429 = vmatmul.mubr.bf16.gmra.mrb[0].mxu0 %v316
  %v430 = vpop.f32.mrb[0].mxu0
  %v431 = vadd.f32 %v338, %v430
  %v432 = vpop.f32.mrb[0].mxu0
  %v433 = vpop.f32.mrb[0].mxu0
  %v434 = vadd.f32 %v338, %v433
  %v435 = vpop.f32.mrb[0].mxu0
  %436 = vdwg.mxu0
  %vm437 = vcmp.gt.f32.partialorder %v423, 0.0
  %vm438 = vcmp.gt.f32.partialorder %v426, 0.0
  %vm439 = vcmp.gt.f32.partialorder %v431, 0.0
  %vm440 = vcmp.gt.f32.partialorder %v434, 0.0
  %v441 = vmul.f32 %v423, 0.2
  %v442 = vmul.f32 %v426, 0.2
  %v443 = vmul.f32 %v431, 0.2
  %v444 = vmul.f32 %v434, 0.2
  %v445 = vsel %vm437, %v423, %v441
  %v446 = vsel %vm438, %v426, %v442
  %v447 = vsel %vm439, %v431, %v443
  %v448 = vsel %vm440, %v434, %v444
  %v449 = vadd.f32 %v177, %v445
  %v450 = vadd.f32 %v178, %v446
  %v451 = vadd.f32 %v179, %v447
  %v452 = vadd.f32 %v180, %v448
  %v453 = vpack.c.bf16 %v450, %v449
  %v454 = vpack.c.bf16 %v452, %v451
  %s455 = scalar_lea.vmem %s3, 64
  %v456 = vld [vmem:[%s455] sm:$0xf]
  %v457 = vld [vmem:[%s455 + $0x4] sm:$0xf]
  %v458 = vld [vmem:[%s455 + $0x8] sm:$0xf]
  %v459 = vld [vmem:[%s455 + $0xc] sm:$0xf]
  %v460 = vld [vmem:[%s455 + $0x10] sm:$0xf]
  %v461 = vld [vmem:[%s455 + $0x14] sm:$0xf]
  %v462 = vld [vmem:[%s455 + $0x18] sm:$0xf]
  %v463 = vld [vmem:[%s455 + $0x1c] sm:$0xf]
  %v464 = vld [vmem:[%s455 + $0x20] sm:$0xf]
  %v465 = vld [vmem:[%s455 + $0x24] sm:$0xf]
  %v466 = vld [vmem:[%s455 + $0x28] sm:$0xf]
  %v467 = vld [vmem:[%s455 + $0x2c] sm:$0xf]
  %v468 = vld [vmem:[%s455 + $0x30] sm:$0xf]
  %v469 = vld [vmem:[%s455 + $0x34] sm:$0xf]
  %v470 = vld [vmem:[%s455 + $0x38] sm:$0xf]
  %v471 = vld [vmem:[%s455 + $0x3c] sm:$0xf]
  %s472 = scalar_lea.vmem %s4, 1
  %v473 = vld [vmem:[%s472] sm:$0x1]
  %v475 = vlaneseq
  %v476 = vshrl.u32 %v475, 7
  %v477 = vsub.s32 0, %v476
  %v478 = vrot.slane %v473, %v477
  %v496 = vunpack.c.l.b16 %v456
  %v497 = vunpack.c.l.b16 %v457
  %v498 = vunpack.c.l.b16 %v458
  %v499 = vunpack.c.l.b16 %v459
  %v500 = vunpack.c.l.b16 %v460
  %v501 = vunpack.c.l.b16 %v461
  %v502 = vunpack.c.l.b16 %v462
  %v503 = vunpack.c.l.b16 %v463
  %v504 = vunpack.c.l.b16 %v464
  %v505 = vunpack.c.l.b16 %v465
  %v506 = vunpack.c.l.b16 %v466
  %v507 = vunpack.c.l.b16 %v467
  %v508 = vunpack.c.l.b16 %v468
  %v509 = vunpack.c.l.b16 %v469
  %v510 = vunpack.c.l.b16 %v470
  %v511 = vunpack.c.l.b16 %v471
  %v512 = vpack.c.b16 %v497, %v496
  %v513 = vpack.c.b16 %v499, %v498
  %v514 = vpack.c.b16 %v501, %v500
  %v515 = vpack.c.b16 %v503, %v502
  %v516 = vpack.c.b16 %v505, %v504
  %v517 = vpack.c.b16 %v507, %v506
  %v518 = vpack.c.b16 %v509, %v508
  %v519 = vpack.c.b16 %v511, %v510
  %528 = vmatprep.subr.bf16.mxu0 0
  %529 = vmatpush1.bf16.msra.mxu0 %v512
  %530 = vmatprep.subr.bf16.mxu0 0
  %531 = vmatpush1.bf16.msra.mxu0 %v513
  %532 = vmatprep.subr.bf16.mxu0 0
  %533 = vmatpush1.bf16.msra.mxu0 %v514
  %534 = vmatprep.subr.bf16.mxu0 0
  %535 = vmatpush1.bf16.msra.mxu0 %v515
  %536 = vmatprep.subr.bf16.mxu0 0
  %537 = vmatpush1.bf16.msra.mxu0 %v516
  %538 = vmatprep.subr.bf16.mxu0 0
  %539 = vmatpush1.bf16.msra.mxu0 %v517
  %540 = vmatprep.subr.bf16.mxu0 0
  %541 = vmatpush1.bf16.msra.mxu0 %v518
  %542 = vmatprep.subr.bf16.mxu0 0
  %543 = vmatpush1.bf16.msra.mxu0 %v519
  %544 = vmatprep.subr.bf16.mxu0 0
  %545 = vmatpush1.bf16.msra.mxu0 0
  %546 = vmatprep.subr.bf16.mxu0 0
  %547 = vmatpush1.bf16.msra.mxu0 0
  %548 = vmatprep.subr.bf16.mxu0 0
  %549 = vmatpush1.bf16.msra.mxu0 0
  %550 = vmatprep.subr.bf16.mxu0 0
  %551 = vmatpush1.bf16.msra.mxu0 0
  %552 = vmatprep.subr.bf16.mxu0 0
  %553 = vmatpush1.bf16.msra.mxu0 0
  %554 = vmatprep.subr.bf16.mxu0 0
  %555 = vmatpush1.bf16.msra.mxu0 0
  %556 = vmatprep.subr.bf16.mxu0 0
  %557 = vmatpush1.bf16.msra.mxu0 0
  %558 = vmatprep.subr.bf16.mxu0 0
  %559 = vmatpush1.bf16.msra.mxu0 0
  %560 = vmatprep.mubr.bf16.mxu0 0
  %561 = vmatmul.mubr.bf16.gmra.mrb[0].mxu0 %v453
  %v562 = vpop.f32.mrb[0].mxu0
  %v563 = vadd.f32 %v478, %v562
  %v564 = vpop.f32.mrb[0].mxu0
  %v565 = vpop.f32.mrb[0].mxu0
  %v566 = vadd.f32 %v478, %v565
  %v567 = vpop.f32.mrb[0].mxu0
  %568 = vmatprep.mubr.bf16.mxu0 0
  %569 = vmatmul.mubr.bf16.gmra.mrb[0].mxu0 %v454
  %v570 = vpop.f32.mrb[0].mxu0
  %v571 = vadd.f32 %v478, %v570
  %v572 = vpop.f32.mrb[0].mxu0
  %v573 = vpop.f32.mrb[0].mxu0
  %v574 = vadd.f32 %v478, %v573
  %v575 = vpop.f32.mrb[0].mxu0
  %576 = vdwg.mxu0
  %vm577 = vcmp.gt.f32.partialorder %v563, 0.0
  %vm578 = vcmp.gt.f32.partialorder %v566, 0.0
  %vm579 = vcmp.gt.f32.partialorder %v571, 0.0
  %vm580 = vcmp.gt.f32.partialorder %v574, 0.0
  %v581 = vmul.f32 %v563, 0.2
  %v582 = vmul.f32 %v566, 0.2
  %v583 = vmul.f32 %v571, 0.2
  %v584 = vmul.f32 %v574, 0.2
  %v585 = vsel %vm577, %v563, %v581
  %v586 = vsel %vm578, %v566, %v582
  %v587 = vsel %vm579, %v571, %v583
  %v588 = vsel %vm580, %v574, %v584
  %v589 = vpack.c.bf16 %v586, %v585
  %v590 = vpack.c.bf16 %v588, %v587
  %s591 = scalar_lea.vmem %s5, 64
  %v592 = vld [vmem:[%s591] sm:$0xf]
  %v593 = vld [vmem:[%s591 + $0x4] sm:$0xf]
  %v594 = vld [vmem:[%s591 + $0x8] sm:$0xf]
  %v595 = vld [vmem:[%s591 + $0xc] sm:$0xf]
  %v596 = vld [vmem:[%s591 + $0x10] sm:$0xf]
  %v597 = vld [vmem:[%s591 + $0x14] sm:$0xf]
  %v598 = vld [vmem:[%s591 + $0x18] sm:$0xf]
  %v599 = vld [vmem:[%s591 + $0x1c] sm:$0xf]
  %v600 = vld [vmem:[%s591 + $0x20] sm:$0xf]
  %v601 = vld [vmem:[%s591 + $0x24] sm:$0xf]
  %v602 = vld [vmem:[%s591 + $0x28] sm:$0xf]
  %v603 = vld [vmem:[%s591 + $0x2c] sm:$0xf]
  %v604 = vld [vmem:[%s591 + $0x30] sm:$0xf]
  %v605 = vld [vmem:[%s591 + $0x34] sm:$0xf]
  %v606 = vld [vmem:[%s591 + $0x38] sm:$0xf]
  %v607 = vld [vmem:[%s591 + $0x3c] sm:$0xf]
  %s608 = scalar_lea.vmem %s6, 1
  %v609 = vld [vmem:[%s608] sm:$0x1]
  %v611 = vlaneseq
  %v612 = vshrl.u32 %v611, 7
  %v613 = vsub.s32 0, %v612
  %v614 = vrot.slane %v609, %v613
  %v632 = vunpack.c.l.b16 %v592
  %v633 = vunpack.c.l.b16 %v593
  %v634 = vunpack.c.l.b16 %v594
  %v635 = vunpack.c.l.b16 %v595
  %v636 = vunpack.c.l.b16 %v596
  %v637 = vunpack.c.l.b16 %v597
  %v638 = vunpack.c.l.b16 %v598
  %v639 = vunpack.c.l.b16 %v599
  %v640 = vunpack.c.l.b16 %v600
  %v641 = vunpack.c.l.b16 %v601
  %v642 = vunpack.c.l.b16 %v602
  %v643 = vunpack.c.l.b16 %v603
  %v644 = vunpack.c.l.b16 %v604
  %v645 = vunpack.c.l.b16 %v605
  %v646 = vunpack.c.l.b16 %v606
  %v647 = vunpack.c.l.b16 %v607
  %v648 = vpack.c.b16 %v633, %v632
  %v649 = vpack.c.b16 %v635, %v634
  %v650 = vpack.c.b16 %v637, %v636
  %v651 = vpack.c.b16 %v639, %v638
  %v652 = vpack.c.b16 %v641, %v640
  %v653 = vpack.c.b16 %v643, %v642
  %v654 = vpack.c.b16 %v645, %v644
  %v655 = vpack.c.b16 %v647, %v646
  %664 = vmatprep.subr.bf16.mxu0 0
  %665 = vmatpush1.bf16.msra.mxu0 %v648
  %666 = vmatprep.subr.bf16.mxu0 0
  %667 = vmatpush1.bf16.msra.mxu0 %v649
  %668 = vmatprep.subr.bf16.mxu0 0
  %669 = vmatpush1.bf16.msra.mxu0 %v650
  %670 = vmatprep.subr.bf16.mxu0 0
  %671 = vmatpush1.bf16.msra.mxu0 %v651
  %672 = vmatprep.subr.bf16.mxu0 0
  %673 = vmatpush1.bf16.msra.mxu0 %v652
  %674 = vmatprep.subr.bf16.mxu0 0
  %675 = vmatpush1.bf16.msra.mxu0 %v653
  %676 = vmatprep.subr.bf16.mxu0 0
  %677 = vmatpush1.bf16.msra.mxu0 %v654
  %678 = vmatprep.subr.bf16.mxu0 0
  %679 = vmatpush1.bf16.msra.mxu0 %v655
  %680 = vmatprep.subr.bf16.mxu0 0
  %681 = vmatpush1.bf16.msra.mxu0 0
  %682 = vmatprep.subr.bf16.mxu0 0
  %683 = vmatpush1.bf16.msra.mxu0 0
  %684 = vmatprep.subr.bf16.mxu0 0
  %685 = vmatpush1.bf16.msra.mxu0 0
  %686 = vmatprep.subr.bf16.mxu0 0
  %687 = vmatpush1.bf16.msra.mxu0 0
  %688 = vmatprep.subr.bf16.mxu0 0
  %689 = vmatpush1.bf16.msra.mxu0 0
  %690 = vmatprep.subr.bf16.mxu0 0
  %691 = vmatpush1.bf16.msra.mxu0 0
  %692 = vmatprep.subr.bf16.mxu0 0
  %693 = vmatpush1.bf16.msra.mxu0 0
  %694 = vmatprep.subr.bf16.mxu0 0
  %695 = vmatpush1.bf16.msra.mxu0 0
  %696 = vmatprep.mubr.bf16.mxu0 0
  %697 = vmatmul.mubr.bf16.gmra.mrb[0].mxu0 %v589
  %v698 = vpop.f32.mrb[0].mxu0
  %v699 = vadd.f32 %v614, %v698
  %v700 = vpop.f32.mrb[0].mxu0
  %v701 = vpop.f32.mrb[0].mxu0
  %v702 = vadd.f32 %v614, %v701
  %v703 = vpop.f32.mrb[0].mxu0
  %704 = vmatprep.mubr.bf16.mxu0 0
  %705 = vmatmul.mubr.bf16.gmra.mrb[0].mxu0 %v590
  %v706 = vpop.f32.mrb[0].mxu0
  %v707 = vadd.f32 %v614, %v706
  %v708 = vpop.f32.mrb[0].mxu0
  %v709 = vpop.f32.mrb[0].mxu0
  %v710 = vadd.f32 %v614, %v709
  %v711 = vpop.f32.mrb[0].mxu0
  %712 = vdwg.mxu0
  %vm713 = vcmp.gt.f32.partialorder %v699, 0.0
  %vm714 = vcmp.gt.f32.partialorder %v702, 0.0
  %vm715 = vcmp.gt.f32.partialorder %v707, 0.0
  %vm716 = vcmp.gt.f32.partialorder %v710, 0.0
  %v717 = vmul.f32 %v699, 0.2
  %v718 = vmul.f32 %v702, 0.2
  %v719 = vmul.f32 %v707, 0.2
  %v720 = vmul.f32 %v710, 0.2
  %v721 = vsel %vm713, %v699, %v717
  %v722 = vsel %vm714, %v702, %v718
  %v723 = vsel %vm715, %v707, %v719
  %v724 = vsel %vm716, %v710, %v720
  %v725 = vadd.f32 %v449, %v721
  %v726 = vadd.f32 %v450, %v722
  %v727 = vadd.f32 %v451, %v723
  %v728 = vadd.f32 %v452, %v724
  %v729 = vpack.c.bf16 %v726, %v725
  %v730 = vpack.c.bf16 %v728, %v727
  %v731 = vld [vmem:[%s7] sm:$0xf]
  %v732 = vld [vmem:[%s7 + $0x4] sm:$0xf]
  %v733 = vld [vmem:[%s7 + $0x8] sm:$0xf]
  %v734 = vld [vmem:[%s7 + $0xc] sm:$0xf]
  %v735 = vld [vmem:[%s7 + $0x10] sm:$0xf]
  %v736 = vld [vmem:[%s7 + $0x14] sm:$0xf]
  %v737 = vld [vmem:[%s7 + $0x18] sm:$0xf]
  %v738 = vld [vmem:[%s7 + $0x1c] sm:$0xf]
  %v739 = vld [vmem:[%s7 + $0x20] sm:$0xf]
  %v740 = vld [vmem:[%s7 + $0x24] sm:$0xf]
  %v741 = vld [vmem:[%s7 + $0x28] sm:$0xf]
  %v742 = vld [vmem:[%s7 + $0x2c] sm:$0xf]
  %v743 = vld [vmem:[%s7 + $0x30] sm:$0xf]
  %v744 = vld [vmem:[%s7 + $0x34] sm:$0xf]
  %v745 = vld [vmem:[%s7 + $0x38] sm:$0xf]
  %v746 = vld [vmem:[%s7 + $0x3c] sm:$0xf]
  %v747 = vld [vmem:[%s8] sm:$0x1]
  %v749 = vlaneseq
  %v750 = vshrl.u32 %v749, 7
  %v751 = vsub.s32 0, %v750
  %v752 = vrot.slane %v747, %v751
  %v770 = vunpack.c.l.b16 %v731
  %v771 = vunpack.c.l.b16 %v732
  %v772 = vunpack.c.l.b16 %v733
  %v773 = vunpack.c.l.b16 %v734
  %v774 = vunpack.c.l.b16 %v735
  %v775 = vunpack.c.l.b16 %v736
  %v776 = vunpack.c.l.b16 %v737
  %v777 = vunpack.c.l.b16 %v738
  %v778 = vunpack.c.l.b16 %v739
  %v779 = vunpack.c.l.b16 %v740
  %v780 = vunpack.c.l.b16 %v741
  %v781 = vunpack.c.l.b16 %v742
  %v782 = vunpack.c.l.b16 %v743
  %v783 = vunpack.c.l.b16 %v744
  %v784 = vunpack.c.l.b16 %v745
  %v785 = vunpack.c.l.b16 %v746
  %v786 = vpack.c.b16 %v771, %v770
  %v787 = vpack.c.b16 %v773, %v772
  %v788 = vpack.c.b16 %v775, %v774
  %v789 = vpack.c.b16 %v777, %v776
  %v790 = vpack.c.b16 %v779, %v778
  %v791 = vpack.c.b16 %v781, %v780
  %v792 = vpack.c.b16 %v783, %v782
  %v793 = vpack.c.b16 %v785, %v784
  %802 = vmatprep.subr.bf16.mxu0 0
  %803 = vmatpush1.bf16.msra.mxu0 %v786
  %804 = vmatprep.subr.bf16.mxu0 0
  %805 = vmatpush1.bf16.msra.mxu0 %v787
  %806 = vmatprep.subr.bf16.mxu0 0
  %807 = vmatpush1.bf16.msra.mxu0 %v788
  %808 = vmatprep.subr.bf16.mxu0 0
  %809 = vmatpush1.bf16.msra.mxu0 %v789
  %810 = vmatprep.subr.bf16.mxu0 0
  %811 = vmatpush1.bf16.msra.mxu0 %v790
  %812 = vmatprep.subr.bf16.mxu0 0
  %813 = vmatpush1.bf16.msra.mxu0 %v791
  %814 = vmatprep.subr.bf16.mxu0 0
  %815 = vmatpush1.bf16.msra.mxu0 %v792
  %816 = vmatprep.subr.bf16.mxu0 0
  %817 = vmatpush1.bf16.msra.mxu0 %v793
  %818 = vmatprep.subr.bf16.mxu0 0
  %819 = vmatpush1.bf16.msra.mxu0 0
  %820 = vmatprep.subr.bf16.mxu0 0
  %821 = vmatpush1.bf16.msra.mxu0 0
  %822 = vmatprep.subr.bf16.mxu0 0
  %823 = vmatpush1.bf16.msra.mxu0 0
  %824 = vmatprep.subr.bf16.mxu0 0
  %825 = vmatpush1.bf16.msra.mxu0 0
  %826 = vmatprep.subr.bf16.mxu0 0
  %827 = vmatpush1.bf16.msra.mxu0 0
  %828 = vmatprep.subr.bf16.mxu0 0
  %829 = vmatpush1.bf16.msra.mxu0 0
  %830 = vmatprep.subr.bf16.mxu0 0
  %831 = vmatpush1.bf16.msra.mxu0 0
  %832 = vmatprep.subr.bf16.mxu0 0
  %833 = vmatpush1.bf16.msra.mxu0 0
  %834 = vmatprep.mubr.bf16.mxu0 0
  %835 = vmatmul.mubr.bf16.gmra.mrb[0].mxu0 %v729
  %v836 = vpop.f32.mrb[0].mxu0
  %v837 = vadd.f32 %v752, %v836
  %v838 = vpop.f32.mrb[0].mxu0
  %v839 = vpop.f32.mrb[0].mxu0
  %v840 = vadd.f32 %v752, %v839
  %v841 = vpop.f32.mrb[0].mxu0
  %842 = vmatprep.mubr.bf16.mxu0 0
  %843 = vmatmul.mubr.bf16.gmra.mrb[0].mxu0 %v730
  %v844 = vpop.f32.mrb[0].mxu0
  %v845 = vadd.f32 %v752, %v844
  %v846 = vpop.f32.mrb[0].mxu0
  %v847 = vpop.f32.mrb[0].mxu0
  %v848 = vadd.f32 %v752, %v847
  %v849 = vpop.f32.mrb[0].mxu0
  %850 = vdwg.mxu0
  %851 = vst [vmem:[%s9] sm:$0xff] %v837
  %852 = vst [vmem:[%s9 + $0x8] sm:$0xff] %v840
  %853 = vst [vmem:[%s9 + $0x10] sm:$0xff] %v845
  %854 = vst [vmem:[%s9 + $0x18] sm:$0xff] %v848
  // Predicated region
  $region38: #{fcblock_forward.1} parent=0 // pred_check
    _
  $region39: #{fcblock_forward.1} parent=0 // pred_check_branch
    %856 = sbr.rel (0) target = $region41
  $region40: #{fcblock_forward.1} parent=0 // pred_region
    _
  $region41: #{fcblock_forward.1} parent=0 // pred_fallthru
    _
  // Predicated region
  $region42: #{fcblock_forward.1} parent=0 // pred_check
    _
  $region43: #{fcblock_forward.1} parent=0 // pred_check_branch
    %858 = sbr.rel (0) target = $region45
  $region44: #{fcblock_forward.1} parent=0 // pred_region
    _
  $region45: #{fcblock_forward.1} parent=0 // pred_fallthru
    _

</llo_original>
